<compile_context>
chip_gen: v5e
topology: v5e:2x2
jax: 0.10.0
libtpu: 0.0.40
codegen_flags: <defaults>
</compile_context>

<pallas_src>
import functools

import jax
import jax.numpy as jnp
from jax.experimental import pallas as pl
from jax.experimental.pallas import tpu as pltpu


def _round_up(x, m):
    return ((x + m - 1) // m) * m


def _mlp_kernel(x_ref, w1_ref, b1_ref, w2_ref, b2_ref, wc_ref, bc_ref, o_ref):
    # x: (TB, L) in compute dtype, w*: compute dtype, b*: (1, ·) f32,
    # o: (TB, Cp) f32.  All matmuls accumulate in f32 on the MXU.
    w_dtype = w1_ref.dtype
    x = x_ref[...]

    # Linear(signal_length -> linear_size) + ReLU
    h = jnp.dot(x.astype(w_dtype), w1_ref[...],
                preferred_element_type=jnp.float32) + b1_ref[...]
    h = jnp.maximum(h, 0.0)

    # Linear(linear_size -> linear_size) + ReLU   (n_linear = 2)
    h = jnp.dot(h.astype(w_dtype), w2_ref[...],
                preferred_element_type=jnp.float32) + b2_ref[...]
    h = jnp.maximum(h, 0.0)

    # Classifier: Linear(linear_size -> n_classes) + LogSoftmax(dim=1) on a
    # lane-dense Cp(=multiple of 128)-wide block.  Padded class lanes carry
    # -inf from the pre-masked bias, so they contribute exp(-inf)=0 to the
    # denominator with no in-kernel iota/select.
    logits = jnp.dot(h.astype(w_dtype), wc_ref[...],
                     preferred_element_type=jnp.float32) + bc_ref[...]
    m = jnp.max(logits, axis=-1, keepdims=True)
    lse = jnp.log(jnp.sum(jnp.exp(logits - m), axis=-1, keepdims=True)) + m
    o_ref[...] = (logits - lse).astype(o_ref.dtype)


@functools.partial(jax.jit, static_argnames=("n_classes", "compute_dtype"))
def mlp_forward(x, params, n_classes, compute_dtype="bfloat16"):
    """x: (B, 1, L).  params: PyTorch-convention (out, in) weights."""
    cdt = jnp.dtype(compute_dtype)
    B = x.shape[0]
    x2d = x.reshape(B, -1)          # nn.Flatten()
    L = x2d.shape[1]
    H = params["w1"].shape[0]

    # Batch tile: large tiles amortize ~0.35us/step pipeline overhead in this
    # mem/overhead-bound regime; round to the packed-sublane granularity of the
    # compute dtype so bf16 MXU operands stay dense.
    g = 16 if cdt.itemsize < 4 else 8
    TB = min(512, _round_up(B, g))
    # Keep >= 2 grid steps when the batch allows it so v7x's two TensorCores
    # both get work via the "parallel" batch axis (no-op on v5e/v6e).
    if _round_up(B, TB) == TB and B > g:
        TB = _round_up((B + 1) // 2, g)
    B_pad = _round_up(B, TB)
    if B_pad != B:
        x2d = jnp.pad(x2d, ((0, B_pad - B), (0, 0)))
    # Stream x in the compute dtype (bf16 halves the dominant HBM->VMEM DMA).
    x2d = x2d.astype(cdt)

    # Lane-dense classifier output block.
    C_pad = _round_up(max(n_classes, 128), 128)

    # PyTorch Linear weight is (out, in); transpose once, cast once.
    w1 = params["w1"].T.astype(cdt)
    w2 = params["w2"].T.astype(cdt)
    wc = jnp.pad(params["wc"].T, ((0, 0), (0, C_pad - n_classes))).astype(cdt)
    b1 = params["b1"].reshape(1, -1).astype(jnp.float32)
    b2 = params["b2"].reshape(1, -1).astype(jnp.float32)
    # Fold the padded-class-lane mask into the bias (-inf lanes).
    bc = jnp.pad(params["bc"].reshape(1, -1).astype(jnp.float32),
                 ((0, 0), (0, C_pad - n_classes)),
                 constant_values=-jnp.inf)

    grid = (B_pad // TB,)
    itemsize = cdt.itemsize

    # Explicit VMEM budget: lifts v5e's 16 MiB default scoped limit, leaves
    # headroom under v7x's 64 MiB physical VMEM per TensorCore.
    weight_bytes = ((w1.size + w2.size + wc.size) * itemsize
                    + (b1.size + b2.size + bc.size) * 4)
    stream_bytes = 2 * TB * (L * itemsize + C_pad * 4)   # double-buffered x / out
    vmem_limit = int(min(48 * 1024 * 1024,
                         max(32 * 1024 * 1024,
                             2 * (weight_bytes + stream_bytes) + (4 << 20))))
    # TODO(synk): for very large linear_size the resident weights exceed this
    # budget; add a K/N grid axis with a VMEM f32 accumulator in that regime.

    cost = pl.CostEstimate(
        flops=2 * B_pad * (L * H + H * H + H * C_pad),
        transcendentals=B_pad * (C_pad + 1),          # exp per lane + log per row
        bytes_accessed=(x2d.size * itemsize
                        + (w1.size + w2.size + wc.size) * itemsize
                        + (b1.size + b2.size + bc.size) * 4
                        + B_pad * C_pad * 4),
    )

    # Single-buffer the constant-index-map (resident) operands: they are DMA'd
    # once, so the default double-buffering would just waste VMEM.
    resident = dict(pipeline_mode=pl.Buffered(1))

    out = pl.pallas_call(
        _mlp_kernel,
        out_shape=jax.ShapeDtypeStruct((B_pad, C_pad), jnp.float32),
        grid=grid,
        in_specs=[
            pl.BlockSpec((TB, L), lambda i: (i, 0)),               # x: streamed
            pl.BlockSpec((L, H), lambda i: (0, 0), **resident),    # weights: resident
            pl.BlockSpec((1, H), lambda i: (0, 0), **resident),
            pl.BlockSpec((H, H), lambda i: (0, 0), **resident),
            pl.BlockSpec((1, H), lambda i: (0, 0), **resident),
            pl.BlockSpec((H, C_pad), lambda i: (0, 0), **resident),
            pl.BlockSpec((1, C_pad), lambda i: (0, 0), **resident),
        ],
        out_specs=pl.BlockSpec((TB, C_pad), lambda i: (i, 0)),
        compiler_params=pltpu.CompilerParams(
            dimension_semantics=("parallel",),
            vmem_limit_bytes=vmem_limit,
        ),
        cost_estimate=cost,
    )(x2d, w1, b1, w2, b2, wc, bc)

    # TODO(synk): consumers that tolerate the padded (B_pad, C_pad) buffer can
    # skip this slice (it is an extra HBM pass in a mem-bound kernel).
    return out[:B, :n_classes]


def init_params(key, signal_length, linear_size, n_classes):
    """Deterministic PyTorch-style (uniform +/- 1/sqrt(fan_in)) init."""
    ks = jax.random.split(key, 6)

    def lin(kw, kb, fan_in, fan_out):
        bound = 1.0 / jnp.sqrt(fan_in)
        w = jax.random.uniform(kw, (fan_out, fan_in), jnp.float32, -bound, bound)
        b = jax.random.uniform(kb, (fan_out,), jnp.float32, -bound, bound)
        return w, b

    w1, b1 = lin(ks[0], ks[1], signal_length, linear_size)
    w2, b2 = lin(ks[2], ks[3], linear_size, linear_size)
    wc, bc = lin(ks[4], ks[5], linear_size, n_classes)
    return {"w1": w1, "b1": b1, "w2": w2, "b2": b2, "wc": wc, "bc": bc}


def reference_forward(x, params):
    """Pure-JAX reference of the PyTorch forward (for sanity check)."""
    B = x.shape[0]
    h = x.reshape(B, -1)
    h = jnp.maximum(h @ params["w1"].T + params["b1"], 0.0)
    h = jnp.maximum(h @ params["w2"].T + params["b2"], 0.0)
    logits = h @ params["wc"].T + params["bc"]
    return jax.nn.log_softmax(logits, axis=1)


if __name__ == "__main__":
    # Small shapes consistent with the module: batch=8, signal_length=128,
    # linear_size=128, n_classes=10.
    B, L, H, C = 8, 128, 128, 10

    key = jax.random.PRNGKey(0)
    kx, kp = jax.random.split(key)
    x = jax.random.normal(kx, (B, 1, L), jnp.float32)  # (batch, channel=1, length)
    params = init_params(kp, signal_length=L, linear_size=H, n_classes=C)

    ref = reference_forward(x, params)

    # f32 path (exact check against the pure-JAX reference).
    out_f32 = jax.block_until_ready(
        mlp_forward(x, params, n_classes=C, compute_dtype="float32"))
    assert out_f32.shape == (B, C)
    assert jnp.allclose(out_f32, ref, atol=1e-5, rtol=1e-5)
    assert jnp.allclose(jnp.sum(jnp.exp(out_f32), axis=1), 1.0, atol=1e-5)

    # Default bf16 MXU path (v6e/v7x fast path) — loose-tolerance smoke check.
    out_bf16 = jax.block_until_ready(mlp_forward(x, params, n_classes=C))
    assert out_bf16.shape == (B, C)
    assert jnp.allclose(out_bf16, ref, atol=1e-1, rtol=1e-1)

    print("KERNEL_OK")
</pallas_src>

<mosaic_0001>
module attributes {stable_mosaic.version = 11 : i64} {
  func.func @_mlp_kernel(%arg0: i32, %arg1: memref<8x128xf32, #tpu.memory_space<vmem>>, %arg2: memref<128x128xf32, #tpu.memory_space<vmem>>, %arg3: memref<1x128xf32, #tpu.memory_space<vmem>>, %arg4: memref<128x128xf32, #tpu.memory_space<vmem>>, %arg5: memref<1x128xf32, #tpu.memory_space<vmem>>, %arg6: memref<128x128xf32, #tpu.memory_space<vmem>>, %arg7: memref<1x128xf32, #tpu.memory_space<vmem>>, %arg8: memref<8x128xf32, #tpu.memory_space<vmem>>) attributes {dimension_semantics = [#tpu.dimension_semantics<parallel>], iteration_bounds = array<i64: 1>, scalar_prefetch = 0 : i64, scratch_operands = 0 : i64, tpu.core_type = #tpu.core_type<tc>, window_params = [{transform_indices = @transform_0, window_bounds = array<i64: 8, 128>}, {pipeline_mode = #tpu.pipeline_mode<synchronous>, transform_indices = @transform_1, window_bounds = array<i64: 128, 128>}, {pipeline_mode = #tpu.pipeline_mode<synchronous>, transform_indices = @transform_2, window_bounds = array<i64: 1, 128>}, {pipeline_mode = #tpu.pipeline_mode<synchronous>, transform_indices = @transform_3, window_bounds = array<i64: 128, 128>}, {pipeline_mode = #tpu.pipeline_mode<synchronous>, transform_indices = @transform_4, window_bounds = array<i64: 1, 128>}, {pipeline_mode = #tpu.pipeline_mode<synchronous>, transform_indices = @transform_5, window_bounds = array<i64: 128, 128>}, {pipeline_mode = #tpu.pipeline_mode<synchronous>, transform_indices = @transform_6, window_bounds = array<i64: 1, 128>}, {transform_indices = @transform_7, window_bounds = array<i64: 8, 128>}]} {
    %c0 = arith.constant 0 : index
    %c0_0 = arith.constant 0 : index
    %0 = vector.load %arg1[%c0, %c0_0] : memref<8x128xf32, #tpu.memory_space<vmem>>, vector<8x128xf32>
    %c0_1 = arith.constant 0 : index
    %c0_2 = arith.constant 0 : index
    %1 = vector.load %arg2[%c0_1, %c0_2] : memref<128x128xf32, #tpu.memory_space<vmem>>, vector<128x128xf32>
    %cst = arith.constant dense<0.000000e+00> : vector<8x128xf32>
    %2 = tpu.matmul %0, %1, %cst {dimension_numbers = #tpu.dot_dimension_numbers<[1], [0], [0], [1], [0, 0, 1, 1], [], []>} : vector<8x128xf32>, vector<128x128xf32>, vector<8x128xf32> -> vector<8x128xf32>
    %c0_3 = arith.constant 0 : index
    %c0_4 = arith.constant 0 : index
    %3 = vector.load %arg3[%c0_3, %c0_4] : memref<1x128xf32, #tpu.memory_space<vmem>>, vector<1x128xf32>
    %4 = vector.broadcast %3 : vector<1x128xf32> to vector<8x128xf32>
    %5 = arith.addf %2, %4 : vector<8x128xf32>
    %cst_5 = arith.constant 0.000000e+00 : f32
    %6 = vector.broadcast %cst_5 : f32 to vector<8x128xf32>
    %7 = arith.maximumf %5, %6 : vector<8x128xf32>
    %c0_6 = arith.constant 0 : index
    %c0_7 = arith.constant 0 : index
    %8 = vector.load %arg4[%c0_6, %c0_7] : memref<128x128xf32, #tpu.memory_space<vmem>>, vector<128x128xf32>
    %cst_8 = arith.constant dense<0.000000e+00> : vector<8x128xf32>
    %9 = tpu.matmul %7, %8, %cst_8 {dimension_numbers = #tpu.dot_dimension_numbers<[1], [0], [0], [1], [0, 0, 1, 1], [], []>} : vector<8x128xf32>, vector<128x128xf32>, vector<8x128xf32> -> vector<8x128xf32>
    %c0_9 = arith.constant 0 : index
    %c0_10 = arith.constant 0 : index
    %10 = vector.load %arg5[%c0_9, %c0_10] : memref<1x128xf32, #tpu.memory_space<vmem>>, vector<1x128xf32>
    %11 = vector.broadcast %10 : vector<1x128xf32> to vector<8x128xf32>
    %12 = arith.addf %9, %11 : vector<8x128xf32>
    %cst_11 = arith.constant 0.000000e+00 : f32
    %13 = vector.broadcast %cst_11 : f32 to vector<8x128xf32>
    %14 = arith.maximumf %12, %13 : vector<8x128xf32>
    %c0_12 = arith.constant 0 : index
    %c0_13 = arith.constant 0 : index
    %15 = vector.load %arg6[%c0_12, %c0_13] : memref<128x128xf32, #tpu.memory_space<vmem>>, vector<128x128xf32>
    %cst_14 = arith.constant dense<0.000000e+00> : vector<8x128xf32>
    %16 = tpu.matmul %14, %15, %cst_14 {dimension_numbers = #tpu.dot_dimension_numbers<[1], [0], [0], [1], [0, 0, 1, 1], [], []>} : vector<8x128xf32>, vector<128x128xf32>, vector<8x128xf32> -> vector<8x128xf32>
    %c0_15 = arith.constant 0 : index
    %c0_16 = arith.constant 0 : index
    %17 = vector.load %arg7[%c0_15, %c0_16] : memref<1x128xf32, #tpu.memory_space<vmem>>, vector<1x128xf32>
    %18 = vector.broadcast %17 : vector<1x128xf32> to vector<8x128xf32>
    %19 = arith.addf %16, %18 : vector<8x128xf32>
    %cst_17 = arith.constant dense<0xFF800000> : vector<8xf32>
    %20 = vector.multi_reduction <maximumf>, %19, %cst_17 [1] : vector<8x128xf32> to vector<8xf32>
    %21 = vector.shape_cast %20 : vector<8xf32> to vector<8x1xf32>
    %22 = vector.broadcast %21 : vector<8x1xf32> to vector<8x128xf32>
    %23 = arith.subf %19, %22 : vector<8x128xf32>
    %24 = math.exp %23 : vector<8x128xf32>
    %cst_18 = arith.constant dense<0.000000e+00> : vector<8xf32>
    %25 = vector.multi_reduction <add>, %24, %cst_18 [1] : vector<8x128xf32> to vector<8xf32>
    %26 = vector.shape_cast %25 : vector<8xf32> to vector<8x1xf32>
    %27 = math.log %26 : vector<8x1xf32>
    %28 = arith.addf %27, %21 : vector<8x1xf32>
    %29 = vector.broadcast %28 : vector<8x1xf32> to vector<8x128xf32>
    %30 = arith.subf %19, %29 : vector<8x128xf32>
    %c0_19 = arith.constant 0 : index
    %c0_20 = arith.constant 0 : index
    %31 = vector.load %arg8[%c0_19, %c0_20] : memref<8x128xf32, #tpu.memory_space<vmem>>, vector<8x128xf32>
    tpu.vector_store %arg8[%c0_19, %c0_20], %30 {strides = array<i32>} : memref<8x128xf32, #tpu.memory_space<vmem>>, vector<8x128xf32>,
    return
  }
  func.func @transform_0(%arg0: i32) -> (i32, i32) {
    %c0_i32 = arith.constant 0 : i32
    %c0_i32_0 = arith.constant 0 : i32
    return %arg0, %c0_i32 : i32, i32
  }
  func.func @transform_1(%arg0: i32) -> (i32, i32) {
    %c0_i32 = arith.constant 0 : i32
    %c0_i32_0 = arith.constant 0 : i32
    %c0_i32_1 = arith.constant 0 : i32
    return %c0_i32, %c0_i32_0 : i32, i32
  }
  func.func @transform_2(%arg0: i32) -> (i32, i32) {
    %c0_i32 = arith.constant 0 : i32
    %c0_i32_0 = arith.constant 0 : i32
    %c0_i32_1 = arith.constant 0 : i32
    return %c0_i32, %c0_i32_0 : i32, i32
  }
  func.func @transform_3(%arg0: i32) -> (i32, i32) {
    %c0_i32 = arith.constant 0 : i32
    %c0_i32_0 = arith.constant 0 : i32
    %c0_i32_1 = arith.constant 0 : i32
    return %c0_i32, %c0_i32_0 : i32, i32
  }
  func.func @transform_4(%arg0: i32) -> (i32, i32) {
    %c0_i32 = arith.constant 0 : i32
    %c0_i32_0 = arith.constant 0 : i32
    %c0_i32_1 = arith.constant 0 : i32
    return %c0_i32, %c0_i32_0 : i32, i32
  }
  func.func @transform_5(%arg0: i32) -> (i32, i32) {
    %c0_i32 = arith.constant 0 : i32
    %c0_i32_0 = arith.constant 0 : i32
    %c0_i32_1 = arith.constant 0 : i32
    return %c0_i32, %c0_i32_0 : i32, i32
  }
  func.func @transform_6(%arg0: i32) -> (i32, i32) {
    %c0_i32 = arith.constant 0 : i32
    %c0_i32_0 = arith.constant 0 : i32
    %c0_i32_1 = arith.constant 0 : i32
    return %c0_i32, %c0_i32_0 : i32, i32
  }
  func.func @transform_7(%arg0: i32) -> (i32, i32) {
    %c0_i32 = arith.constant 0 : i32
    %c0_i32_0 = arith.constant 0 : i32
    return %arg0, %c0_i32 : i32, i32
  }
}

</mosaic_0001>

<llo_original>
// kernel: mlp_forward.1
$region0: #{mlp_forward.1}
  #allocation0 [shape = 'u32[]', space=smem, size = 0x4, offset = 0x4, fixed_abs, tag = 'smem constant byte address 0x4 - core index']
  #allocation1 [shape = 'u32[72,128]{1,0:T(1,128)}', space=vmem, size = 0x9000, scoped, tag = 'internal scratch']
  %s0 = inlined_call_operand.vmem [shape: f32[8,128], index: 0, kind: input, shape index: {}]
  %s1 = inlined_call_operand.vmem [shape: f32[128,128], index: 1, kind: input, shape index: {}]
  %s2 = inlined_call_operand.vmem [shape: f32[1,128], index: 2, kind: input, shape index: {}]
  %s3 = inlined_call_operand.vmem [shape: f32[128,128], index: 3, kind: input, shape index: {}]
  %s4 = inlined_call_operand.vmem [shape: f32[1,128], index: 4, kind: input, shape index: {}]
  %s5 = inlined_call_operand.vmem [shape: f32[128,128], index: 5, kind: input, shape index: {}]
  %s6 = inlined_call_operand.vmem [shape: f32[1,128], index: 6, kind: input, shape index: {}]
  %s7 = inlined_call_operand.hbm [shape: f32[8,128], index: 7, kind: output, shape index: {}]
  %s8 = sld [smem:[#allocation0]]
  $region38: #{mlp_forward.1} parent=0
    _
  %s10 = ssub.s32 1, %s8
  %s11 = scalar_select 0, %s10, %s8
  $region1: #{mlp_forward.1} parent=0
    #allocation2 [shape = 'u8[4096]{0}', space=vmem, size = 0x1000, scoped, tag = 'output window, operand 0, single buffered']
    #allocation3 [shape = 's32[1]{0}', space=sflag, size = 0x4, scoped, tag = 'scoped memory for mlp_forward.1']
    %12 = vsyncpa [#allocation3], 0
    // Predicated region
    $region2: #{mlp_forward.1} parent=1 // pred_check
      _
    $region3: #{mlp_forward.1} parent=1 // pred_check_branch
      %14 = sbr.rel (0) target = $region5
    $region4: #{mlp_forward.1} parent=1 // pred_region
      _
    $region5: #{mlp_forward.1} parent=1 // pred_fallthru
      _
    // Predicated region
    $region6: #{mlp_forward.1} parent=1 // pred_check
      _
    $region7: #{mlp_forward.1} parent=1 // pred_check_branch
      %16 = sbr.rel (0) target = $region9
    $region8: #{mlp_forward.1} parent=1 // pred_region
      _
    $region9: #{mlp_forward.1} parent=1 // pred_fallthru
      _
    // Predicated region
    $region10: #{mlp_forward.1} parent=1 // pred_check
      _
    $region11: #{mlp_forward.1} parent=1 // pred_check_branch
      %18 = sbr.rel (0) target = $region13
    $region12: #{mlp_forward.1} parent=1 // pred_region
      _
    $region13: #{mlp_forward.1} parent=1 // pred_fallthru
      _
    // Predicated region
    $region14: #{mlp_forward.1} parent=1 // pred_check
      _
    $region15: #{mlp_forward.1} parent=1 // pred_check_branch
      %20 = sbr.rel (0) target = $region17
    $region16: #{mlp_forward.1} parent=1 // pred_region
      _
    $region17: #{mlp_forward.1} parent=1 // pred_fallthru
      _
    // Predicated region
    $region18: #{mlp_forward.1} parent=1 // pred_check
      _
    $region19: #{mlp_forward.1} parent=1 // pred_check_branch
      %22 = sbr.rel (0) target = $region21
    $region20: #{mlp_forward.1} parent=1 // pred_region
      _
    $region21: #{mlp_forward.1} parent=1 // pred_fallthru
      _
    // Predicated region
    $region22: #{mlp_forward.1} parent=1 // pred_check
      _
    $region23: #{mlp_forward.1} parent=1 // pred_check_branch
      %24 = sbr.rel (0) target = $region25
    $region24: #{mlp_forward.1} parent=1 // pred_region
      _
    $region25: #{mlp_forward.1} parent=1 // pred_fallthru
      _
    // Predicated region
    $region26: #{mlp_forward.1} parent=1 // pred_check
      _
    $region27: #{mlp_forward.1} parent=1 // pred_check_branch
      %26 = sbr.rel (0) target = $region29
    $region28: #{mlp_forward.1} parent=1 // pred_region
      _
    $region29: #{mlp_forward.1} parent=1 // pred_fallthru
      _
    %v27 = vld [vmem:[%s0] sm:$0xff]
    %v28 = vld [vmem:[%s1] sm:$0xff]
    %v29 = vld [vmem:[%s1 + $0x8] sm:$0xff]
    %v30 = vld [vmem:[%s1 + $0x10] sm:$0xff]
    %v31 = vld [vmem:[%s1 + $0x18] sm:$0xff]
    %v32 = vld [vmem:[%s1 + $0x20] sm:$0xff]
    %v33 = vld [vmem:[%s1 + $0x28] sm:$0xff]
    %v34 = vld [vmem:[%s1 + $0x30] sm:$0xff]
    %v35 = vld [vmem:[%s1 + $0x38] sm:$0xff]
    %v36 = vld [vmem:[%s1 + $0x40] sm:$0xff]
    %v37 = vld [vmem:[%s1 + $0x48] sm:$0xff]
    %v38 = vld [vmem:[%s1 + $0x50] sm:$0xff]
    %v39 = vld [vmem:[%s1 + $0x58] sm:$0xff]
    %v40 = vld [vmem:[%s1 + $0x60] sm:$0xff]
    %v41 = vld [vmem:[%s1 + $0x68] sm:$0xff]
    %v42 = vld [vmem:[%s1 + $0x70] sm:$0xff]
    %v43 = vld [vmem:[%s1 + $0x78] sm:$0xff]
    %v44 = vld [vmem:[%s2] sm:$0x1]
    %v46 = vperm.slane %v44, 0
    %48 = vmatpush.msra.mxu0 %v43
    %49 = vmatpush.msra.mxu0 %v42
    %50 = vmatpush.msra.mxu0 %v41
    %51 = vmatpush.msra.mxu0 %v40
    %52 = vmatpush.msra.mxu0 %v39
    %53 = vmatpush.msra.mxu0 %v38
    %54 = vmatpush.msra.mxu0 %v37
    %55 = vmatpush.msra.mxu0 %v36
    %56 = vmatpush.msra.mxu0 %v35
    %57 = vmatpush.msra.mxu0 %v34
    %58 = vmatpush.msra.mxu0 %v33
    %59 = vmatpush.msra.mxu0 %v32
    %60 = vmatpush.msra.mxu0 %v31
    %61 = vmatpush.msra.mxu0 %v30
    %62 = vmatpush.msra.mxu0 %v29
    %63 = vmatpush.msra.mxu0 %v28
    %64 = vmatmul.f32.gmra.mxu0 %v27
    %v65 = vpop.f32.mrf.mxu0
    %v66 = vadd.f32 %v46, %v65
    %67 = vdwg.mxu0
    %v68 = vmax.f32 %v66, 0.0
    %v69 = vld [vmem:[%s3] sm:$0xff]
    %v70 = vld [vmem:[%s3 + $0x8] sm:$0xff]
    %v71 = vld [vmem:[%s3 + $0x10] sm:$0xff]
    %v72 = vld [vmem:[%s3 + $0x18] sm:$0xff]
    %v73 = vld [vmem:[%s3 + $0x20] sm:$0xff]
    %v74 = vld [vmem:[%s3 + $0x28] sm:$0xff]
    %v75 = vld [vmem:[%s3 + $0x30] sm:$0xff]
    %v76 = vld [vmem:[%s3 + $0x38] sm:$0xff]
    %v77 = vld [vmem:[%s3 + $0x40] sm:$0xff]
    %v78 = vld [vmem:[%s3 + $0x48] sm:$0xff]
    %v79 = vld [vmem:[%s3 + $0x50] sm:$0xff]
    %v80 = vld [vmem:[%s3 + $0x58] sm:$0xff]
    %v81 = vld [vmem:[%s3 + $0x60] sm:$0xff]
    %v82 = vld [vmem:[%s3 + $0x68] sm:$0xff]
    %v83 = vld [vmem:[%s3 + $0x70] sm:$0xff]
    %v84 = vld [vmem:[%s3 + $0x78] sm:$0xff]
    %v85 = vld [vmem:[%s4] sm:$0x1]
    %v87 = vperm.slane %v85, 0
    %89 = vmatpush.msra.mxu0 %v84
    %90 = vmatpush.msra.mxu0 %v83
    %91 = vmatpush.msra.mxu0 %v82
    %92 = vmatpush.msra.mxu0 %v81
    %93 = vmatpush.msra.mxu0 %v80
    %94 = vmatpush.msra.mxu0 %v79
    %95 = vmatpush.msra.mxu0 %v78
    %96 = vmatpush.msra.mxu0 %v77
    %97 = vmatpush.msra.mxu0 %v76
    %98 = vmatpush.msra.mxu0 %v75
    %99 = vmatpush.msra.mxu0 %v74
    %100 = vmatpush.msra.mxu0 %v73
    %101 = vmatpush.msra.mxu0 %v72
    %102 = vmatpush.msra.mxu0 %v71
    %103 = vmatpush.msra.mxu0 %v70
    %104 = vmatpush.msra.mxu0 %v69
    %105 = vmatmul.f32.gmra.mxu0 %v68
    %v106 = vpop.f32.mrf.mxu0
    %v107 = vadd.f32 %v87, %v106
    %108 = vdwg.mxu0
    %v109 = vmax.f32 %v107, 0.0
    %v110 = vld [vmem:[%s5] sm:$0xff]
    %v111 = vld [vmem:[%s5 + $0x8] sm:$0xff]
    %v112 = vld [vmem:[%s5 + $0x10] sm:$0xff]
    %v113 = vld [vmem:[%s5 + $0x18] sm:$0xff]
    %v114 = vld [vmem:[%s5 + $0x20] sm:$0xff]
    %v115 = vld [vmem:[%s5 + $0x28] sm:$0xff]
    %v116 = vld [vmem:[%s5 + $0x30] sm:$0xff]
    %v117 = vld [vmem:[%s5 + $0x38] sm:$0xff]
    %v118 = vld [vmem:[%s5 + $0x40] sm:$0xff]
    %v119 = vld [vmem:[%s5 + $0x48] sm:$0xff]
    %v120 = vld [vmem:[%s5 + $0x50] sm:$0xff]
    %v121 = vld [vmem:[%s5 + $0x58] sm:$0xff]
    %v122 = vld [vmem:[%s5 + $0x60] sm:$0xff]
    %v123 = vld [vmem:[%s5 + $0x68] sm:$0xff]
    %v124 = vld [vmem:[%s5 + $0x70] sm:$0xff]
    %v125 = vld [vmem:[%s5 + $0x78] sm:$0xff]
    %v126 = vld [vmem:[%s6] sm:$0x1]
    %v128 = vperm.slane %v126, 0
    %130 = vmatpush.msra.mxu0 %v125
    %131 = vmatpush.msra.mxu0 %v124
    %132 = vmatpush.msra.mxu0 %v123
    %133 = vmatpush.msra.mxu0 %v122
    %134 = vmatpush.msra.mxu0 %v121
    %135 = vmatpush.msra.mxu0 %v120
    %136 = vmatpush.msra.mxu0 %v119
    %137 = vmatpush.msra.mxu0 %v118
    %138 = vmatpush.msra.mxu0 %v117
    %139 = vmatpush.msra.mxu0 %v116
    %140 = vmatpush.msra.mxu0 %v115
    %141 = vmatpush.msra.mxu0 %v114
    %142 = vmatpush.msra.mxu0 %v113
    %143 = vmatpush.msra.mxu0 %v112
    %144 = vmatpush.msra.mxu0 %v111
    %145 = vmatpush.msra.mxu0 %v110
    %146 = vmatmul.f32.gmra.mxu0 %v109
    %v147 = vpop.f32.mrf.mxu0
    %v148 = vadd.f32 %v128, %v147
    %149 = vdwg.mxu0
    %150 = vmax.xlane.f32.xlu0 %v148
    %v151 = vpop.xlane.xlu0 %150
    %v152 = vsub.f32 %v148, %v151
    %v153 = vmul.f32 %v152, 1.442695
    %v154 = vpow.pop %v153
    %155 = vadd.xlane.f32.xlu0 %v154
    %v156 = vpop.xlane.xlu0 %155
    %v157 = vlog2.pop %v156
    %v158 = vmul.f32 %v157, 0.6931472
    %v159 = vadd.f32 %v158, %v151
    %v160 = vsub.f32 %v148, %v159
    %161 = vst [vmem:[#allocation2] sm:$0xff] %v160
    // Predicated region
    $region30: #{mlp_forward.1} parent=1 // pred_check
      _
    $region31: #{mlp_forward.1} parent=1 // pred_check_branch
      %163 = sbr.rel (0) target = $region33
    $region32: #{mlp_forward.1} parent=1 // pred_region
      %165 = vsyncadd [#allocation3], 0
      %s167 = sshll.u32 [#allocation2], 4
      %s168 = int_to_ptr.vmem [resolvable:$true] %s167
      %s169 = sshll.u32 %s7, 4
      %s170 = int_to_ptr.hbm [resolvable:$true] %s169
      %172 = dma.vmem_to_hbm [thread:$0]  %s168, 128, %s170, [#allocation3]
    $region33: #{mlp_forward.1} parent=1 // pred_fallthru
      _
    // Predicated region
    $region34: #{mlp_forward.1} parent=1 // pred_check
      _
    $region35: #{mlp_forward.1} parent=1 // pred_check_branch
      %174 = sbr.rel (0) target = $region37
    $region36: #{mlp_forward.1} parent=1 // pred_region
      %176 = dma.done [#allocation3], 128
    $region37: #{mlp_forward.1} parent=1 // pred_fallthru
      _
    %177 = vsyncpa [#allocation3], 1

</llo_original>
